<compile_context>
chip_gen: v5e
topology: v5e:2x2
jax: 0.10.0
libtpu: 0.0.40
codegen_flags: <defaults>
</compile_context>

<pallas_src>
import functools

import jax
import jax.numpy as jnp
from jax import lax
from jax.experimental import pallas as pl
from jax.experimental.pallas import tpu as pltpu


LN_EPS = 1e-5  # PyTorch nn.LayerNorm default eps


def _round_up(n, m):
    return ((n + m - 1) // m) * m


def _block(h, w, b, g, beta, slope, matmul_dtype):
    """Linear + LayerNorm + (Leaky)ReLU on a (TB, Din) tile, all in registers."""
    hb = jnp.dot(h.astype(matmul_dtype), w.astype(matmul_dtype),
                 preferred_element_type=jnp.float32) + b
    mean = jnp.mean(hb, axis=-1, keepdims=True)
    centered = hb - mean
    var = jnp.mean(centered * centered, axis=-1, keepdims=True)  # biased, like PyTorch
    hn = centered * lax.rsqrt(var + LN_EPS) * g + beta
    return jnp.where(hn > 0, hn, slope * hn)  # slope==0 -> exact ReLU


def _mlp_kernel(x_ref,
                w_pre_ref, b_pre_ref, g_pre_ref, beta_pre_ref,
                w_hid_ref, b_hid_ref, g_hid_ref, beta_hid_ref,
                w_out_ref, b_out_ref,
                o_ref, *, n_layers, matmul_dtype):
    # pre: Linear(n_in, H) + LayerNorm + ReLU
    h = _block(x_ref[...], w_pre_ref[...], b_pre_ref[...],
               g_pre_ref[...], beta_pre_ref[...], 0.0, matmul_dtype)
    # hidden blocks: static unroll over the stacked weights (activation stays
    # resident in VMEM/vregs across layers -- no HBM traffic between layers).
    for j in range(n_layers):
        h = _block(h, w_hid_ref[j], b_hid_ref[j],
                   g_hid_ref[j], beta_hid_ref[j], 0.2, matmul_dtype)
    # out: Linear(H, 1) as VPU multiply + XLU lane reduction (f32), fused here.
    y = jnp.sum(h * w_out_ref[...], axis=-1, keepdims=True) + b_out_ref[...]
    o_ref[...] = y.astype(o_ref.dtype)


def mlp_classifier_forward(params, x, *, n_layers, block_b=512,
                           matmul_dtype=jnp.bfloat16):
    """Full MLPClassifier forward in a single pallas_call, gridded over batch."""
    B, n_in = x.shape
    H = params["w_pre"].shape[1]

    # Batch tile: multiple of 8 sublanes, capped at block_b; pad B up to a
    # multiple of the tile (padded rows are harmless: LN(0-row) -> beta=0).
    TB = int(min(block_b, _round_up(max(B, 1), 8)))
    Bp = int(pl.cdiv(B, TB)) * TB
    if Bp != B:
        x = jnp.pad(x, ((0, Bp - B), (0, 0)))
    grid = (Bp // TB,)

    kernel = functools.partial(_mlp_kernel, n_layers=n_layers,
                               matmul_dtype=matmul_dtype)

    def full2(shape):
        return pl.BlockSpec(shape, lambda i: (0, 0))

    def full3(shape):
        return pl.BlockSpec(shape, lambda i: (0, 0, 0))

    out = pl.pallas_call(
        kernel,
        out_shape=jax.ShapeDtypeStruct((Bp, 1), jnp.float32),
        grid=grid,
        in_specs=[
            pl.BlockSpec((TB, n_in), lambda i: (i, 0)),      # x: tiled over batch
            full2(params["w_pre"].shape),                    # weights: whole-array,
            full2(params["b_pre"].shape),                    # resident across grid
            full2(params["g_pre"].shape),
            full2(params["beta_pre"].shape),
            full3(params["w_hid"].shape),
            full3(params["b_hid"].shape),
            full3(params["g_hid"].shape),
            full3(params["beta_hid"].shape),
            full2(params["w_out"].shape),
            full2(params["b_out"].shape),
        ],
        out_specs=pl.BlockSpec((TB, 1), lambda i: (i, 0)),
        compiler_params=pltpu.CompilerParams(
            dimension_semantics=("parallel",)),              # shard batch over TCs
    )(x,
      params["w_pre"], params["b_pre"], params["g_pre"], params["beta_pre"],
      params["w_hid"], params["b_hid"], params["g_hid"], params["beta_hid"],
      params["w_out"], params["b_out"])
    return out[:B]


def init_params(key, n_in, n_hidden, n_layers):
    """Deterministic PyTorch-Linear-style uniform init, hidden layers stacked."""
    def linear(key, fan_in, fan_out):
        k1, k2 = jax.random.split(key)
        bound = float(fan_in) ** -0.5
        w = jax.random.uniform(k1, (fan_in, fan_out), jnp.float32, -bound, bound)
        b = jax.random.uniform(k2, (1, fan_out), jnp.float32, -bound, bound)
        return w, b

    keys = jax.random.split(key, n_layers + 2)
    w_pre, b_pre = linear(keys[0], n_in, n_hidden)

    L = max(n_layers, 1)  # n_layers==0: keep a dummy (unused) stack for shape sanity
    w_hid = jnp.zeros((L, n_hidden, n_hidden), jnp.float32)
    b_hid = jnp.zeros((L, 1, n_hidden), jnp.float32)
    for j in range(n_layers):
        w, b = linear(keys[1 + j], n_hidden, n_hidden)
        w_hid = w_hid.at[j].set(w)
        b_hid = b_hid.at[j].set(b)
    g_hid = jnp.ones((L, 1, n_hidden), jnp.float32)
    beta_hid = jnp.zeros((L, 1, n_hidden), jnp.float32)

    w_out_col, b_out = linear(keys[-1], n_hidden, 1)   # (H, 1), (1, 1)
    w_out = w_out_col.reshape(1, n_hidden)             # row layout for VPU reduce

    return dict(
        w_pre=w_pre, b_pre=b_pre,
        g_pre=jnp.ones((1, n_hidden), jnp.float32),
        beta_pre=jnp.zeros((1, n_hidden), jnp.float32),
        w_hid=w_hid, b_hid=b_hid, g_hid=g_hid, beta_hid=beta_hid,
        w_out=w_out, b_out=b_out,
    )


def reference_forward(params, x, *, n_layers, matmul_dtype=jnp.bfloat16):
    """Pure-JAX reference with the same matmul precision as the kernel."""
    def block(h, w, b, g, beta, slope):
        hb = jnp.dot(h.astype(matmul_dtype), w.astype(matmul_dtype),
                     preferred_element_type=jnp.float32) + b
        mean = jnp.mean(hb, axis=-1, keepdims=True)
        var = jnp.mean((hb - mean) ** 2, axis=-1, keepdims=True)
        hn = (hb - mean) * lax.rsqrt(var + LN_EPS) * g + beta
        return jnp.where(hn > 0, hn, slope * hn)

    h = block(x, params["w_pre"], params["b_pre"],
              params["g_pre"], params["beta_pre"], 0.0)
    for j in range(n_layers):
        h = block(h, params["w_hid"][j], params["b_hid"][j],
                  params["g_hid"][j], params["beta_hid"][j], 0.2)
    return jnp.sum(h * params["w_out"], axis=-1, keepdims=True) + params["b_out"]


if __name__ == "__main__":
    n_in, n_hidden, n_layers = 32, 128, 2
    batch = 8

    key = jax.random.PRNGKey(0)
    k_params, k_x = jax.random.split(key)
    params = init_params(k_params, n_in, n_hidden, n_layers)
    x = jax.random.normal(k_x, (batch, n_in), jnp.float32)

    y = mlp_classifier_forward(params, x, n_layers=n_layers)
    y = jax.block_until_ready(y)

    y_ref = reference_forward(params, x, n_layers=n_layers)
    assert y.shape == (batch, 1)
    assert jnp.allclose(y, y_ref, atol=2e-3, rtol=2e-3), float(
        jnp.max(jnp.abs(y - y_ref)))

    print("KERNEL_OK")
</pallas_src>

<mosaic_0001>
module attributes {stable_mosaic.version = 11 : i64} {
  func.func @_mlp_kernel(%arg0: i32, %arg1: memref<8x32xf32, #tpu.memory_space<vmem>>, %arg2: memref<32x128xf32, #tpu.memory_space<vmem>>, %arg3: memref<1x128xf32, #tpu.memory_space<vmem>>, %arg4: memref<1x128xf32, #tpu.memory_space<vmem>>, %arg5: memref<1x128xf32, #tpu.memory_space<vmem>>, %arg6: memref<2x128x128xf32, #tpu.memory_space<vmem>>, %arg7: memref<2x1x128xf32, #tpu.memory_space<vmem>>, %arg8: memref<2x1x128xf32, #tpu.memory_space<vmem>>, %arg9: memref<2x1x128xf32, #tpu.memory_space<vmem>>, %arg10: memref<1x128xf32, #tpu.memory_space<vmem>>, %arg11: memref<1x1xf32, #tpu.memory_space<vmem>>, %arg12: memref<8x1xf32, #tpu.memory_space<vmem>>) attributes {dimension_semantics = [#tpu.dimension_semantics<parallel>], iteration_bounds = array<i64: 1>, scalar_prefetch = 0 : i64, scratch_operands = 0 : i64, tpu.core_type = #tpu.core_type<tc>, window_params = [{transform_indices = @transform_0, window_bounds = array<i64: 8, 32>}, {pipeline_mode = #tpu.pipeline_mode<synchronous>, transform_indices = @transform_1, window_bounds = array<i64: 32, 128>}, {pipeline_mode = #tpu.pipeline_mode<synchronous>, transform_indices = @transform_2, window_bounds = array<i64: 1, 128>}, {pipeline_mode = #tpu.pipeline_mode<synchronous>, transform_indices = @transform_3, window_bounds = array<i64: 1, 128>}, {pipeline_mode = #tpu.pipeline_mode<synchronous>, transform_indices = @transform_4, window_bounds = array<i64: 1, 128>}, {pipeline_mode = #tpu.pipeline_mode<synchronous>, transform_indices = @transform_5, window_bounds = array<i64: 2, 128, 128>}, {pipeline_mode = #tpu.pipeline_mode<synchronous>, transform_indices = @transform_6, window_bounds = array<i64: 2, 1, 128>}, {pipeline_mode = #tpu.pipeline_mode<synchronous>, transform_indices = @transform_7, window_bounds = array<i64: 2, 1, 128>}, {pipeline_mode = #tpu.pipeline_mode<synchronous>, transform_indices = @transform_8, window_bounds = array<i64: 2, 1, 128>}, {pipeline_mode = #tpu.pipeline_mode<synchronous>, transform_indices = @transform_9, window_bounds = array<i64: 1, 128>}, {pipeline_mode = #tpu.pipeline_mode<synchronous>, transform_indices = @transform_10, window_bounds = array<i64: 1, 1>}, {transform_indices = @transform_11, window_bounds = array<i64: 8, 1>}]} {
    %c0 = arith.constant 0 : index
    %c0_0 = arith.constant 0 : index
    %0 = vector.load %arg1[%c0, %c0_0] : memref<8x32xf32, #tpu.memory_space<vmem>>, vector<8x32xf32>
    %c0_1 = arith.constant 0 : index
    %c0_2 = arith.constant 0 : index
    %1 = vector.load %arg2[%c0_1, %c0_2] : memref<32x128xf32, #tpu.memory_space<vmem>>, vector<32x128xf32>
    %c0_3 = arith.constant 0 : index
    %c0_4 = arith.constant 0 : index
    %2 = vector.load %arg3[%c0_3, %c0_4] : memref<1x128xf32, #tpu.memory_space<vmem>>, vector<1x128xf32>
    %c0_5 = arith.constant 0 : index
    %c0_6 = arith.constant 0 : index
    %3 = vector.load %arg4[%c0_5, %c0_6] : memref<1x128xf32, #tpu.memory_space<vmem>>, vector<1x128xf32>
    %c0_7 = arith.constant 0 : index
    %c0_8 = arith.constant 0 : index
    %4 = vector.load %arg5[%c0_7, %c0_8] : memref<1x128xf32, #tpu.memory_space<vmem>>, vector<1x128xf32>
    %5 = arith.truncf %0 : vector<8x32xf32> to vector<8x32xbf16>
    %6 = arith.truncf %1 : vector<32x128xf32> to vector<32x128xbf16>
    %cst = arith.constant dense<0.000000e+00> : vector<8x128xf32>
    %7 = tpu.matmul %5, %6, %cst {dimension_numbers = #tpu.dot_dimension_numbers<[1], [0], [0], [1], [0, 0, 1, 1], [], []>} : vector<8x32xbf16>, vector<32x128xbf16>, vector<8x128xf32> -> vector<8x128xf32>
    %8 = vector.broadcast %2 : vector<1x128xf32> to vector<8x128xf32>
    %9 = arith.addf %7, %8 : vector<8x128xf32>
    %cst_9 = arith.constant dense<0.000000e+00> : vector<8xf32>
    %10 = vector.multi_reduction <add>, %9, %cst_9 [1] : vector<8x128xf32> to vector<8xf32>
    %11 = vector.shape_cast %10 : vector<8xf32> to vector<8x1xf32>
    %cst_10 = arith.constant 1.280000e+02 : f32
    %12 = vector.broadcast %cst_10 : f32 to vector<8x1xf32>
    %13 = arith.divf %11, %12 : vector<8x1xf32>
    %14 = vector.broadcast %13 : vector<8x1xf32> to vector<8x128xf32>
    %15 = arith.subf %9, %14 : vector<8x128xf32>
    %16 = arith.mulf %15, %15 : vector<8x128xf32>
    %cst_11 = arith.constant dense<0.000000e+00> : vector<8xf32>
    %17 = vector.multi_reduction <add>, %16, %cst_11 [1] : vector<8x128xf32> to vector<8xf32>
    %18 = vector.shape_cast %17 : vector<8xf32> to vector<8x1xf32>
    %cst_12 = arith.constant 1.280000e+02 : f32
    %19 = vector.broadcast %cst_12 : f32 to vector<8x1xf32>
    %20 = arith.divf %18, %19 : vector<8x1xf32>
    %cst_13 = arith.constant 9.99999974E-6 : f32
    %21 = vector.broadcast %cst_13 : f32 to vector<8x1xf32>
    %22 = arith.addf %20, %21 : vector<8x1xf32>
    %23 = math.rsqrt %22 : vector<8x1xf32>
    %24 = vector.broadcast %23 : vector<8x1xf32> to vector<8x128xf32>
    %25 = arith.mulf %15, %24 : vector<8x128xf32>
    %26 = vector.broadcast %3 : vector<1x128xf32> to vector<8x128xf32>
    %27 = arith.mulf %25, %26 : vector<8x128xf32>
    %28 = vector.broadcast %4 : vector<1x128xf32> to vector<8x128xf32>
    %29 = arith.addf %27, %28 : vector<8x128xf32>
    %cst_14 = arith.constant 0.000000e+00 : f32
    %30 = vector.broadcast %cst_14 : f32 to vector<8x128xf32>
    %31 = arith.cmpf ogt, %29, %30 : vector<8x128xf32>
    %cst_15 = arith.constant 0.000000e+00 : f32
    %32 = vector.broadcast %cst_15 : f32 to vector<8x128xf32>
    %33 = arith.mulf %32, %29 : vector<8x128xf32>
    %34 = arith.select %31, %29, %33 : vector<8x128xi1>, vector<8x128xf32>
    %c0_16 = arith.constant 0 : index
    %c0_17 = arith.constant 0 : index
    %c0_18 = arith.constant 0 : index
    %35 = vector.load %arg6[%c0_16, %c0_17, %c0_18] : memref<2x128x128xf32, #tpu.memory_space<vmem>>, vector<1x128x128xf32>
    %36 = vector.shape_cast %35 : vector<1x128x128xf32> to vector<128x128xf32>
    %c0_19 = arith.constant 0 : index
    %c0_20 = arith.constant 0 : index
    %c0_21 = arith.constant 0 : index
    %37 = vector.load %arg7[%c0_19, %c0_20, %c0_21] : memref<2x1x128xf32, #tpu.memory_space<vmem>>, vector<1x1x128xf32>
    %38 = vector.shape_cast %37 : vector<1x1x128xf32> to vector<1x128xf32>
    %c0_22 = arith.constant 0 : index
    %c0_23 = arith.constant 0 : index
    %c0_24 = arith.constant 0 : index
    %39 = vector.load %arg8[%c0_22, %c0_23, %c0_24] : memref<2x1x128xf32, #tpu.memory_space<vmem>>, vector<1x1x128xf32>
    %40 = vector.shape_cast %39 : vector<1x1x128xf32> to vector<1x128xf32>
    %c0_25 = arith.constant 0 : index
    %c0_26 = arith.constant 0 : index
    %c0_27 = arith.constant 0 : index
    %41 = vector.load %arg9[%c0_25, %c0_26, %c0_27] : memref<2x1x128xf32, #tpu.memory_space<vmem>>, vector<1x1x128xf32>
    %42 = vector.shape_cast %41 : vector<1x1x128xf32> to vector<1x128xf32>
    %43 = arith.truncf %34 : vector<8x128xf32> to vector<8x128xbf16>
    %44 = arith.truncf %36 : vector<128x128xf32> to vector<128x128xbf16>
    %cst_28 = arith.constant dense<0.000000e+00> : vector<8x128xf32>
    %45 = tpu.matmul %43, %44, %cst_28 {dimension_numbers = #tpu.dot_dimension_numbers<[1], [0], [0], [1], [0, 0, 1, 1], [], []>} : vector<8x128xbf16>, vector<128x128xbf16>, vector<8x128xf32> -> vector<8x128xf32>
    %46 = vector.broadcast %38 : vector<1x128xf32> to vector<8x128xf32>
    %47 = arith.addf %45, %46 : vector<8x128xf32>
    %cst_29 = arith.constant dense<0.000000e+00> : vector<8xf32>
    %48 = vector.multi_reduction <add>, %47, %cst_29 [1] : vector<8x128xf32> to vector<8xf32>
    %49 = vector.shape_cast %48 : vector<8xf32> to vector<8x1xf32>
    %cst_30 = arith.constant 1.280000e+02 : f32
    %50 = vector.broadcast %cst_30 : f32 to vector<8x1xf32>
    %51 = arith.divf %49, %50 : vector<8x1xf32>
    %52 = vector.broadcast %51 : vector<8x1xf32> to vector<8x128xf32>
    %53 = arith.subf %47, %52 : vector<8x128xf32>
    %54 = arith.mulf %53, %53 : vector<8x128xf32>
    %cst_31 = arith.constant dense<0.000000e+00> : vector<8xf32>
    %55 = vector.multi_reduction <add>, %54, %cst_31 [1] : vector<8x128xf32> to vector<8xf32>
    %56 = vector.shape_cast %55 : vector<8xf32> to vector<8x1xf32>
    %cst_32 = arith.constant 1.280000e+02 : f32
    %57 = vector.broadcast %cst_32 : f32 to vector<8x1xf32>
    %58 = arith.divf %56, %57 : vector<8x1xf32>
    %cst_33 = arith.constant 9.99999974E-6 : f32
    %59 = vector.broadcast %cst_33 : f32 to vector<8x1xf32>
    %60 = arith.addf %58, %59 : vector<8x1xf32>
    %61 = math.rsqrt %60 : vector<8x1xf32>
    %62 = vector.broadcast %61 : vector<8x1xf32> to vector<8x128xf32>
    %63 = arith.mulf %53, %62 : vector<8x128xf32>
    %64 = vector.broadcast %40 : vector<1x128xf32> to vector<8x128xf32>
    %65 = arith.mulf %63, %64 : vector<8x128xf32>
    %66 = vector.broadcast %42 : vector<1x128xf32> to vector<8x128xf32>
    %67 = arith.addf %65, %66 : vector<8x128xf32>
    %cst_34 = arith.constant 0.000000e+00 : f32
    %68 = vector.broadcast %cst_34 : f32 to vector<8x128xf32>
    %69 = arith.cmpf ogt, %67, %68 : vector<8x128xf32>
    %cst_35 = arith.constant 2.000000e-01 : f32
    %70 = vector.broadcast %cst_35 : f32 to vector<8x128xf32>
    %71 = arith.mulf %70, %67 : vector<8x128xf32>
    %72 = arith.select %69, %67, %71 : vector<8x128xi1>, vector<8x128xf32>
    %c1 = arith.constant 1 : index
    %c0_36 = arith.constant 0 : index
    %c0_37 = arith.constant 0 : index
    %73 = vector.load %arg6[%c1, %c0_36, %c0_37] : memref<2x128x128xf32, #tpu.memory_space<vmem>>, vector<1x128x128xf32>
    %74 = vector.shape_cast %73 : vector<1x128x128xf32> to vector<128x128xf32>
    %c1_38 = arith.constant 1 : index
    %c0_39 = arith.constant 0 : index
    %c0_40 = arith.constant 0 : index
    %75 = vector.load %arg7[%c1_38, %c0_39, %c0_40] : memref<2x1x128xf32, #tpu.memory_space<vmem>>, vector<1x1x128xf32>
    %76 = vector.shape_cast %75 : vector<1x1x128xf32> to vector<1x128xf32>
    %c1_41 = arith.constant 1 : index
    %c0_42 = arith.constant 0 : index
    %c0_43 = arith.constant 0 : index
    %77 = vector.load %arg8[%c1_41, %c0_42, %c0_43] : memref<2x1x128xf32, #tpu.memory_space<vmem>>, vector<1x1x128xf32>
    %78 = vector.shape_cast %77 : vector<1x1x128xf32> to vector<1x128xf32>
    %c1_44 = arith.constant 1 : index
    %c0_45 = arith.constant 0 : index
    %c0_46 = arith.constant 0 : index
    %79 = vector.load %arg9[%c1_44, %c0_45, %c0_46] : memref<2x1x128xf32, #tpu.memory_space<vmem>>, vector<1x1x128xf32>
    %80 = vector.shape_cast %79 : vector<1x1x128xf32> to vector<1x128xf32>
    %81 = arith.truncf %72 : vector<8x128xf32> to vector<8x128xbf16>
    %82 = arith.truncf %74 : vector<128x128xf32> to vector<128x128xbf16>
    %cst_47 = arith.constant dense<0.000000e+00> : vector<8x128xf32>
    %83 = tpu.matmul %81, %82, %cst_47 {dimension_numbers = #tpu.dot_dimension_numbers<[1], [0], [0], [1], [0, 0, 1, 1], [], []>} : vector<8x128xbf16>, vector<128x128xbf16>, vector<8x128xf32> -> vector<8x128xf32>
    %84 = vector.broadcast %76 : vector<1x128xf32> to vector<8x128xf32>
    %85 = arith.addf %83, %84 : vector<8x128xf32>
    %cst_48 = arith.constant dense<0.000000e+00> : vector<8xf32>
    %86 = vector.multi_reduction <add>, %85, %cst_48 [1] : vector<8x128xf32> to vector<8xf32>
    %87 = vector.shape_cast %86 : vector<8xf32> to vector<8x1xf32>
    %cst_49 = arith.constant 1.280000e+02 : f32
    %88 = vector.broadcast %cst_49 : f32 to vector<8x1xf32>
    %89 = arith.divf %87, %88 : vector<8x1xf32>
    %90 = vector.broadcast %89 : vector<8x1xf32> to vector<8x128xf32>
    %91 = arith.subf %85, %90 : vector<8x128xf32>
    %92 = arith.mulf %91, %91 : vector<8x128xf32>
    %cst_50 = arith.constant dense<0.000000e+00> : vector<8xf32>
    %93 = vector.multi_reduction <add>, %92, %cst_50 [1] : vector<8x128xf32> to vector<8xf32>
    %94 = vector.shape_cast %93 : vector<8xf32> to vector<8x1xf32>
    %cst_51 = arith.constant 1.280000e+02 : f32
    %95 = vector.broadcast %cst_51 : f32 to vector<8x1xf32>
    %96 = arith.divf %94, %95 : vector<8x1xf32>
    %cst_52 = arith.constant 9.99999974E-6 : f32
    %97 = vector.broadcast %cst_52 : f32 to vector<8x1xf32>
    %98 = arith.addf %96, %97 : vector<8x1xf32>
    %99 = math.rsqrt %98 : vector<8x1xf32>
    %100 = vector.broadcast %99 : vector<8x1xf32> to vector<8x128xf32>
    %101 = arith.mulf %91, %100 : vector<8x128xf32>
    %102 = vector.broadcast %78 : vector<1x128xf32> to vector<8x128xf32>
    %103 = arith.mulf %101, %102 : vector<8x128xf32>
    %104 = vector.broadcast %80 : vector<1x128xf32> to vector<8x128xf32>
    %105 = arith.addf %103, %104 : vector<8x128xf32>
    %cst_53 = arith.constant 0.000000e+00 : f32
    %106 = vector.broadcast %cst_53 : f32 to vector<8x128xf32>
    %107 = arith.cmpf ogt, %105, %106 : vector<8x128xf32>
    %cst_54 = arith.constant 2.000000e-01 : f32
    %108 = vector.broadcast %cst_54 : f32 to vector<8x128xf32>
    %109 = arith.mulf %108, %105 : vector<8x128xf32>
    %110 = arith.select %107, %105, %109 : vector<8x128xi1>, vector<8x128xf32>
    %c0_55 = arith.constant 0 : index
    %c0_56 = arith.constant 0 : index
    %111 = vector.load %arg10[%c0_55, %c0_56] : memref<1x128xf32, #tpu.memory_space<vmem>>, vector<1x128xf32>
    %112 = vector.broadcast %111 : vector<1x128xf32> to vector<8x128xf32>
    %113 = arith.mulf %110, %112 : vector<8x128xf32>
    %cst_57 = arith.constant dense<0.000000e+00> : vector<8xf32>
    %114 = vector.multi_reduction <add>, %113, %cst_57 [1] : vector<8x128xf32> to vector<8xf32>
    %115 = vector.shape_cast %114 : vector<8xf32> to vector<8x1xf32>
    %c0_58 = arith.constant 0 : index
    %c0_59 = arith.constant 0 : index
    %116 = vector.load %arg11[%c0_58, %c0_59] : memref<1x1xf32, #tpu.memory_space<vmem>>, vector<1x1xf32>
    %117 = vector.broadcast %116 : vector<1x1xf32> to vector<8x1xf32>
    %118 = arith.addf %115, %117 : vector<8x1xf32>
    %c0_60 = arith.constant 0 : index
    %c0_61 = arith.constant 0 : index
    %119 = vector.load %arg12[%c0_60, %c0_61] : memref<8x1xf32, #tpu.memory_space<vmem>>, vector<8x1xf32>
    tpu.vector_store %arg12[%c0_60, %c0_61], %118 {strides = array<i32>} : memref<8x1xf32, #tpu.memory_space<vmem>>, vector<8x1xf32>,
    return
  }
  func.func @transform_0(%arg0: i32) -> (i32, i32) {
    %c0_i32 = arith.constant 0 : i32
    %c0_i32_0 = arith.constant 0 : i32
    return %arg0, %c0_i32 : i32, i32
  }
  func.func @transform_1(%arg0: i32) -> (i32, i32) {
    %c0_i32 = arith.constant 0 : i32
    %c0_i32_0 = arith.constant 0 : i32
    %c0_i32_1 = arith.constant 0 : i32
    return %c0_i32, %c0_i32_0 : i32, i32
  }
  func.func @transform_2(%arg0: i32) -> (i32, i32) {
    %c0_i32 = arith.constant 0 : i32
    %c0_i32_0 = arith.constant 0 : i32
    %c0_i32_1 = arith.constant 0 : i32
    return %c0_i32, %c0_i32_0 : i32, i32
  }
  func.func @transform_3(%arg0: i32) -> (i32, i32) {
    %c0_i32 = arith.constant 0 : i32
    %c0_i32_0 = arith.constant 0 : i32
    %c0_i32_1 = arith.constant 0 : i32
    return %c0_i32, %c0_i32_0 : i32, i32
  }
  func.func @transform_4(%arg0: i32) -> (i32, i32) {
    %c0_i32 = arith.constant 0 : i32
    %c0_i32_0 = arith.constant 0 : i32
    %c0_i32_1 = arith.constant 0 : i32
    return %c0_i32, %c0_i32_0 : i32, i32
  }
  func.func @transform_5(%arg0: i32) -> (i32, i32, i32) {
    %c0_i32 = arith.constant 0 : i32
    %c0_i32_0 = arith.constant 0 : i32
    %c0_i32_1 = arith.constant 0 : i32
    %c0_i32_2 = arith.constant 0 : i32
    return %c0_i32, %c0_i32_0, %c0_i32_1 : i32, i32, i32
  }
  func.func @transform_6(%arg0: i32) -> (i32, i32, i32) {
    %c0_i32 = arith.constant 0 : i32
    %c0_i32_0 = arith.constant 0 : i32
    %c0_i32_1 = arith.constant 0 : i32
    %c0_i32_2 = arith.constant 0 : i32
    return %c0_i32, %c0_i32_0, %c0_i32_1 : i32, i32, i32
  }
  func.func @transform_7(%arg0: i32) -> (i32, i32, i32) {
    %c0_i32 = arith.constant 0 : i32
    %c0_i32_0 = arith.constant 0 : i32
    %c0_i32_1 = arith.constant 0 : i32
    %c0_i32_2 = arith.constant 0 : i32
    return %c0_i32, %c0_i32_0, %c0_i32_1 : i32, i32, i32
  }
  func.func @transform_8(%arg0: i32) -> (i32, i32, i32) {
    %c0_i32 = arith.constant 0 : i32
    %c0_i32_0 = arith.constant 0 : i32
    %c0_i32_1 = arith.constant 0 : i32
    %c0_i32_2 = arith.constant 0 : i32
    return %c0_i32, %c0_i32_0, %c0_i32_1 : i32, i32, i32
  }
  func.func @transform_9(%arg0: i32) -> (i32, i32) {
    %c0_i32 = arith.constant 0 : i32
    %c0_i32_0 = arith.constant 0 : i32
    %c0_i32_1 = arith.constant 0 : i32
    return %c0_i32, %c0_i32_0 : i32, i32
  }
  func.func @transform_10(%arg0: i32) -> (i32, i32) {
    %c0_i32 = arith.constant 0 : i32
    %c0_i32_0 = arith.constant 0 : i32
    %c0_i32_1 = arith.constant 0 : i32
    return %c0_i32, %c0_i32_0 : i32, i32
  }
  func.func @transform_11(%arg0: i32) -> (i32, i32) {
    %c0_i32 = arith.constant 0 : i32
    %c0_i32_0 = arith.constant 0 : i32
    return %arg0, %c0_i32 : i32, i32
  }
}

</mosaic_0001>

<llo_original>
// kernel: tpu_custom_call.1
$region0: #{tpu_custom_call.1}
  #allocation0 [shape = 'u32[]', space=smem, size = 0x4, offset = 0x4, fixed_abs, tag = 'smem constant byte address 0x4 - core index']
  #allocation1 [shape = 'u32[72,128]{1,0:T(1,128)}', space=vmem, size = 0x9000, scoped, tag = 'internal scratch']
  #allocation2 [shape = 'f32[1,1]{1,0:T(1,128)S(1)}', space=vmem, size = 0x200, scoped, tag = 'scoped memory for tpu_custom_call.1']
  %s0 = inlined_call_operand.hbm [shape: f32[8,32], index: 0, kind: input, shape index: {}]
  %s1 = inlined_call_operand.hbm [shape: f32[32,128], index: 1, kind: input, shape index: {}]
  %s2 = inlined_call_operand.hbm [shape: f32[1,128], index: 2, kind: input, shape index: {}]
  %s3 = inlined_call_operand.hbm [shape: f32[1,128], index: 3, kind: input, shape index: {}]
  %s4 = inlined_call_operand.hbm [shape: f32[1,128], index: 4, kind: input, shape index: {}]
  %s5 = inlined_call_operand.hbm [shape: f32[2,128,128], index: 5, kind: input, shape index: {}]
  %s6 = inlined_call_operand.vmem [shape: f32[2,1,128], index: 6, kind: input, shape index: {}]
  %s7 = inlined_call_operand.vmem [shape: f32[2,1,128], index: 7, kind: input, shape index: {}]
  %s8 = inlined_call_operand.vmem [shape: f32[2,1,128], index: 8, kind: input, shape index: {}]
  %s9 = inlined_call_operand.vmem [shape: f32[1,128], index: 9, kind: input, shape index: {}]
  %s10 = inlined_call_operand.<no memory space> [shape: f32[1,1], index: 10, kind: input, shape index: {}]
  %s11 = inlined_call_operand.vmem [shape: f32[8,1], index: 11, kind: output, shape index: {}]
  %s12 = sld [smem:[#allocation0]]
  $region78: #{tpu_custom_call.1} parent=0
    _
  %s14 = ssub.s32 1, %s12
  %s15 = scalar_select 0, %s14, %s12
  %v16 = vstv %s10
  %17 = vst [vmem:[#allocation2] sm:$0x1] %v16
  $region1: #{tpu_custom_call.1} parent=0
    #allocation3 [shape = 'u8[4096]{0}', space=vmem, size = 0x1000, scoped, tag = 'input window, operand 0, single buffered']
    #allocation4 [shape = 's32[1]{0}', space=sflag, size = 0x4, scoped, tag = 'scoped memory for tpu_custom_call.1']
    #allocation5 [shape = 'u8[16384]{0}', space=vmem, size = 0x4000, scoped, tag = 'input window, operand 1, single buffered']
    #allocation6 [shape = 's32[1]{0}', space=sflag, size = 0x4, scoped, tag = 'scoped memory for tpu_custom_call.1']
    #allocation7 [shape = 'u8[512]{0}', space=vmem, size = 0x400, scoped, tag = 'input window, operand 2, single buffered']
    #allocation8 [shape = 'u8[512]{0}', space=vmem, size = 0x400, scoped, tag = 'input window, operand 3, single buffered']
    #allocation9 [shape = 's32[1]{0}', space=sflag, size = 0x4, scoped, tag = 'scoped memory for tpu_custom_call.1']
    #allocation10 [shape = 'u8[512]{0}', space=vmem, size = 0x400, scoped, tag = 'input window, operand 4, single buffered']
    #allocation11 [shape = 'u8[131072]{0}', space=vmem, size = 0x20000, scoped, tag = 'input window, operand 5, single buffered']
    #allocation12 [shape = 's32[1]{0}', space=sflag, size = 0x4, scoped, tag = 'scoped memory for tpu_custom_call.1']
    %18 = vsyncpa [#allocation4], 0
    %19 = vsyncpa [#allocation6], 0
    %20 = vsyncpa [#allocation9], 0
    %21 = vsyncpa [#allocation12], 0
    // Predicated region
    $region2: #{tpu_custom_call.1} parent=1 // pred_check
      _
    $region3: #{tpu_custom_call.1} parent=1 // pred_check_branch
      %23 = sbr.rel (0) target = $region5
    $region4: #{tpu_custom_call.1} parent=1 // pred_region
      %25 = vsyncadd [#allocation4], 0
      %s27 = sshll.u32 %s0, 4
      %s28 = int_to_ptr.hbm [resolvable:$true] %s27
      %s29 = sshll.u32 [#allocation3], 4
      %s30 = int_to_ptr.vmem [resolvable:$true] %s29
      %32 = dma.hbm_to_vmem [thread:$0]  %s28, 128, %s30, [#allocation4]
    $region5: #{tpu_custom_call.1} parent=1 // pred_fallthru
      _
    // Predicated region
    $region6: #{tpu_custom_call.1} parent=1 // pred_check
      _
    $region7: #{tpu_custom_call.1} parent=1 // pred_check_branch
      %34 = sbr.rel (0) target = $region9
    $region8: #{tpu_custom_call.1} parent=1 // pred_region
      %36 = vsyncadd [#allocation6], 0
      %s37 = sshll.u32 %s1, 4
      %s38 = int_to_ptr.hbm [resolvable:$true] %s37
      %s39 = sshll.u32 [#allocation5], 4
      %s40 = int_to_ptr.vmem [resolvable:$true] %s39
      %45 = dma.hbm_to_vmem [thread:$0]  %s38, 512, %s40, [#allocation6], 128, 128, 8
    $region9: #{tpu_custom_call.1} parent=1 // pred_fallthru
      _
    // Predicated region
    $region10: #{tpu_custom_call.1} parent=1 // pred_check
      _
    $region11: #{tpu_custom_call.1} parent=1 // pred_check_branch
      %47 = sbr.rel (0) target = $region13
    $region12: #{tpu_custom_call.1} parent=1 // pred_region
      %49 = vsyncadd [#allocation6], 0
      %s51 = sshll.u32 %s2, 4
      %s52 = int_to_ptr.hbm [resolvable:$true] %s51
      %s53 = sshll.u32 [#allocation7], 4
      %s54 = int_to_ptr.vmem [resolvable:$true] %s53
      %56 = dma.hbm_to_vmem [thread:$0]  %s52, 16, %s54, [#allocation6]
    $region13: #{tpu_custom_call.1} parent=1 // pred_fallthru
      _
    // Predicated region
    $region14: #{tpu_custom_call.1} parent=1 // pred_check
      _
    $region15: #{tpu_custom_call.1} parent=1 // pred_check_branch
      %58 = sbr.rel (0) target = $region17
    $region16: #{tpu_custom_call.1} parent=1 // pred_region
      %60 = vsyncadd [#allocation9], 0
      %s62 = sshll.u32 %s3, 4
      %s63 = int_to_ptr.hbm [resolvable:$true] %s62
      %s64 = sshll.u32 [#allocation8], 4
      %s65 = int_to_ptr.vmem [resolvable:$true] %s64
      %67 = dma.hbm_to_vmem [thread:$0]  %s63, 16, %s65, [#allocation9]
    $region17: #{tpu_custom_call.1} parent=1 // pred_fallthru
      _
    // Predicated region
    $region18: #{tpu_custom_call.1} parent=1 // pred_check
      _
    $region19: #{tpu_custom_call.1} parent=1 // pred_check_branch
      %69 = sbr.rel (0) target = $region21
    $region20: #{tpu_custom_call.1} parent=1 // pred_region
      %71 = vsyncadd [#allocation9], 0
      %s73 = sshll.u32 %s4, 4
      %s74 = int_to_ptr.hbm [resolvable:$true] %s73
      %s75 = sshll.u32 [#allocation10], 4
      %s76 = int_to_ptr.vmem [resolvable:$true] %s75
      %78 = dma.hbm_to_vmem [thread:$0]  %s74, 16, %s76, [#allocation9]
    $region21: #{tpu_custom_call.1} parent=1 // pred_fallthru
      _
    // Predicated region
    $region22: #{tpu_custom_call.1} parent=1 // pred_check
      _
    $region23: #{tpu_custom_call.1} parent=1 // pred_check_branch
      %80 = sbr.rel (0) target = $region25
    $region24: #{tpu_custom_call.1} parent=1 // pred_region
      %82 = vsyncadd [#allocation12], 0
      %s83 = sshll.u32 %s5, 4
      %s84 = int_to_ptr.hbm [resolvable:$true] %s83
      %s85 = sshll.u32 [#allocation11], 4
      %s86 = int_to_ptr.vmem [resolvable:$true] %s85
      %91 = dma.hbm_to_vmem [thread:$0]  %s84, 4096, %s86, [#allocation12], 128, 128, 8
    $region25: #{tpu_custom_call.1} parent=1 // pred_fallthru
      _
    // Predicated region
    $region26: #{tpu_custom_call.1} parent=1 // pred_check
      _
    $region27: #{tpu_custom_call.1} parent=1 // pred_check_branch
      %93 = sbr.rel (0) target = $region29
    $region28: #{tpu_custom_call.1} parent=1 // pred_region
      _
    $region29: #{tpu_custom_call.1} parent=1 // pred_fallthru
      _
    // Predicated region
    $region30: #{tpu_custom_call.1} parent=1 // pred_check
      _
    $region31: #{tpu_custom_call.1} parent=1 // pred_check_branch
      %95 = sbr.rel (0) target = $region33
    $region32: #{tpu_custom_call.1} parent=1 // pred_region
      _
    $region33: #{tpu_custom_call.1} parent=1 // pred_fallthru
      _
    // Predicated region
    $region34: #{tpu_custom_call.1} parent=1 // pred_check
      _
    $region35: #{tpu_custom_call.1} parent=1 // pred_check_branch
      %97 = sbr.rel (0) target = $region37
    $region36: #{tpu_custom_call.1} parent=1 // pred_region
      _
    $region37: #{tpu_custom_call.1} parent=1 // pred_fallthru
      _
    // Predicated region
    $region38: #{tpu_custom_call.1} parent=1 // pred_check
      _
    $region39: #{tpu_custom_call.1} parent=1 // pred_check_branch
      %99 = sbr.rel (0) target = $region41
    $region40: #{tpu_custom_call.1} parent=1 // pred_region
      _
    $region41: #{tpu_custom_call.1} parent=1 // pred_fallthru
      _
    // Predicated region
    $region42: #{tpu_custom_call.1} parent=1 // pred_check
      _
    $region43: #{tpu_custom_call.1} parent=1 // pred_check_branch
      %101 = sbr.rel (0) target = $region45
    $region44: #{tpu_custom_call.1} parent=1 // pred_region
      _
    $region45: #{tpu_custom_call.1} parent=1 // pred_fallthru
      _
    // Predicated region
    $region46: #{tpu_custom_call.1} parent=1 // pred_check
      _
    $region47: #{tpu_custom_call.1} parent=1 // pred_check_branch
      %103 = sbr.rel (0) target = $region49
    $region48: #{tpu_custom_call.1} parent=1 // pred_region
      %105 = dma.done [#allocation4], 128
    $region49: #{tpu_custom_call.1} parent=1 // pred_fallthru
      _
    // Predicated region
    $region50: #{tpu_custom_call.1} parent=1 // pred_check
      _
    $region51: #{tpu_custom_call.1} parent=1 // pred_check_branch
      %107 = sbr.rel (0) target = $region53
    $region52: #{tpu_custom_call.1} parent=1 // pred_region
      %109 = dma.done [#allocation6], 512
    $region53: #{tpu_custom_call.1} parent=1 // pred_fallthru
      _
    // Predicated region
    $region54: #{tpu_custom_call.1} parent=1 // pred_check
      _
    $region55: #{tpu_custom_call.1} parent=1 // pred_check_branch
      %111 = sbr.rel (0) target = $region57
    $region56: #{tpu_custom_call.1} parent=1 // pred_region
      %113 = dma.done [#allocation6], 16
    $region57: #{tpu_custom_call.1} parent=1 // pred_fallthru
      _
    // Predicated region
    $region58: #{tpu_custom_call.1} parent=1 // pred_check
      _
    $region59: #{tpu_custom_call.1} parent=1 // pred_check_branch
      %115 = sbr.rel (0) target = $region61
    $region60: #{tpu_custom_call.1} parent=1 // pred_region
      %117 = dma.done [#allocation9], 16
    $region61: #{tpu_custom_call.1} parent=1 // pred_fallthru
      _
    // Predicated region
    $region62: #{tpu_custom_call.1} parent=1 // pred_check
      _
    $region63: #{tpu_custom_call.1} parent=1 // pred_check_branch
      %119 = sbr.rel (0) target = $region65
    $region64: #{tpu_custom_call.1} parent=1 // pred_region
      %121 = dma.done [#allocation9], 16
    $region65: #{tpu_custom_call.1} parent=1 // pred_fallthru
      _
    // Predicated region
    $region66: #{tpu_custom_call.1} parent=1 // pred_check
      _
    $region67: #{tpu_custom_call.1} parent=1 // pred_check_branch
      %123 = sbr.rel (0) target = $region69
    $region68: #{tpu_custom_call.1} parent=1 // pred_region
      %125 = dma.done [#allocation12], 4096
    $region69: #{tpu_custom_call.1} parent=1 // pred_fallthru
      _
    %v127 = vld [vmem:[#allocation3] sm:$0xff]
    %v128 = vld [vmem:[#allocation5] sm:$0xff]
    %v129 = vld [vmem:[#allocation5 + $0x8] sm:$0xff]
    %v130 = vld [vmem:[#allocation5 + $0x10] sm:$0xff]
    %v131 = vld [vmem:[#allocation5 + $0x18] sm:$0xff]
    %v132 = vld [vmem:[#allocation7] sm:$0x1]
    %v133 = vld [vmem:[#allocation8] sm:$0x1]
    %v134 = vld [vmem:[#allocation10] sm:$0x1]
    %v135 = vpack.c.bf16 %v127, %v127
    %v136 = vpack.c.bf16 %v129, %v128
    %v137 = vpack.c.bf16 %v131, %v130
    %v139 = vperm.slane %v132, 0
    %vm141 = vcmask 261120
    %v143 = vsel %vm141, %v135, 0
    %145 = vmatpush.bf16.msra.mxu0 0
    %146 = vmatpush.bf16.msra.mxu0 0
    %147 = vmatpush.bf16.msra.mxu0 0
    %148 = vmatpush.bf16.msra.mxu0 0
    %149 = vmatpush.bf16.msra.mxu0 0
    %150 = vmatpush.bf16.msra.mxu0 0
    %151 = vmatpush.bf16.msra.mxu0 %v137
    %152 = vmatpush.bf16.msra.mxu0 %v136
    %153 = vmatmul.bf16.gmra.mxu0 %v143
    %v154 = vpop.f32.mrf.mxu0
    %v155 = vadd.f32 %v139, %v154
    %v156 = vpop.f32.mrf.mxu0
    %157 = vdwg.mxu0
    %158 = vadd.xlane.f32.xlu0 %v155
    %v159 = vpop.xlane.xlu0 %158
    %v160 = vrcp.pop 128.0
    %v161 = vmul.f32 128.0, %v160
    %v162 = vsub.f32 1.0, %v161
    %v163 = vmul.f32 %v160, %v162
    %v164 = vadd.f32 %v160, %v163
    %vm165 = vweird.f32 %v160
    %v166 = vsel %vm165, %v160, %v164
    %v167 = vmul.f32 %v159, %v166
    %v168 = vsub.f32 %v155, %v167
    %v169 = vmul.f32 %v168, %v168
    %170 = vadd.xlane.f32.xlu0 %v169
    %v171 = vpop.xlane.xlu0 %170
    %v172 = vmul.f32 %v171, %v166
    %v173 = vadd.f32 %v172, 1e-05
    %v174 = vrsqrt.pop %v173
    %v175 = vmul.f32 %v174, %v173
    %v176 = vmul.f32 %v175, %v174
    %v177 = vmul.f32 0.5, %v176
    %v178 = vsub.f32 1.5, %v177
    %v179 = vmul.f32 %v174, %v178
    %vm180 = vweird.f32 %v173
    %vm181 = vweird.f32 %v174
    %vm182 = vmor %vm180, %vm181
    %v183 = vsel %vm182, %v174, %v179
    %v184 = vmul.f32 %v168, %v183
    %v186 = vperm.slane %v133, 0
    %v188 = vmul.f32 %v184, %v186
    %v190 = vperm.slane %v134, 0
    %v192 = vadd.f32 %v188, %v190
    %vm193 = vcmp.gt.f32.partialorder %v192, 0.0
    %v194 = vmul.f32 %v192, 0.0
    %v195 = vsel %vm193, %v192, %v194
    %v196 = vld [vmem:[#allocation11] sm:$0xff]
    %v197 = vld [vmem:[#allocation11 + $0x8] sm:$0xff]
    %v198 = vld [vmem:[#allocation11 + $0x10] sm:$0xff]
    %v199 = vld [vmem:[#allocation11 + $0x18] sm:$0xff]
    %v200 = vld [vmem:[#allocation11 + $0x20] sm:$0xff]
    %v201 = vld [vmem:[#allocation11 + $0x28] sm:$0xff]
    %v202 = vld [vmem:[#allocation11 + $0x30] sm:$0xff]
    %v203 = vld [vmem:[#allocation11 + $0x38] sm:$0xff]
    %v204 = vld [vmem:[#allocation11 + $0x40] sm:$0xff]
    %v205 = vld [vmem:[#allocation11 + $0x48] sm:$0xff]
    %v206 = vld [vmem:[#allocation11 + $0x50] sm:$0xff]
    %v207 = vld [vmem:[#allocation11 + $0x58] sm:$0xff]
    %v208 = vld [vmem:[#allocation11 + $0x60] sm:$0xff]
    %v209 = vld [vmem:[#allocation11 + $0x68] sm:$0xff]
    %v210 = vld [vmem:[#allocation11 + $0x70] sm:$0xff]
    %v211 = vld [vmem:[#allocation11 + $0x78] sm:$0xff]
    %v212 = vld [vmem:[%s6] sm:$0x1]
    %v213 = vld [vmem:[%s7] sm:$0x1]
    %v214 = vld [vmem:[%s8] sm:$0x1]
    %v215 = vpack.c.bf16 %v195, %v195
    %v216 = vpack.c.bf16 %v197, %v196
    %v217 = vpack.c.bf16 %v199, %v198
    %v218 = vpack.c.bf16 %v201, %v200
    %v219 = vpack.c.bf16 %v203, %v202
    %v220 = vpack.c.bf16 %v205, %v204
    %v221 = vpack.c.bf16 %v207, %v206
    %v222 = vpack.c.bf16 %v209, %v208
    %v223 = vpack.c.bf16 %v211, %v210
    %v225 = vperm.slane %v212, 0
    %227 = vmatpush.bf16.msra.mxu0 %v223
    %228 = vmatpush.bf16.msra.mxu0 %v222
    %229 = vmatpush.bf16.msra.mxu0 %v221
    %230 = vmatpush.bf16.msra.mxu0 %v220
    %231 = vmatpush.bf16.msra.mxu0 %v219
    %232 = vmatpush.bf16.msra.mxu0 %v218
    %233 = vmatpush.bf16.msra.mxu0 %v217
    %234 = vmatpush.bf16.msra.mxu0 %v216
    %235 = vmatmul.bf16.gmra.mxu0 %v215
    %v236 = vpop.f32.mrf.mxu0
    %v237 = vadd.f32 %v225, %v236
    %v238 = vpop.f32.mrf.mxu0
    %239 = vdwg.mxu0
    %240 = vadd.xlane.f32.xlu0 %v237
    %v241 = vpop.xlane.xlu0 %240
    %v242 = vmul.f32 %v241, %v166
    %v243 = vsub.f32 %v237, %v242
    %v244 = vmul.f32 %v243, %v243
    %245 = vadd.xlane.f32.xlu0 %v244
    %v246 = vpop.xlane.xlu0 %245
    %v247 = vmul.f32 %v246, %v166
    %v248 = vadd.f32 %v247, 1e-05
    %v249 = vrsqrt.pop %v248
    %v250 = vmul.f32 %v249, %v248
    %v251 = vmul.f32 %v250, %v249
    %v252 = vmul.f32 0.5, %v251
    %v253 = vsub.f32 1.5, %v252
    %v254 = vmul.f32 %v249, %v253
    %vm255 = vweird.f32 %v248
    %vm256 = vweird.f32 %v249
    %vm257 = vmor %vm255, %vm256
    %v258 = vsel %vm257, %v249, %v254
    %v259 = vmul.f32 %v243, %v258
    %v261 = vperm.slane %v213, 0
    %v263 = vmul.f32 %v259, %v261
    %v265 = vperm.slane %v214, 0
    %v267 = vadd.f32 %v263, %v265
    %vm268 = vcmp.gt.f32.partialorder %v267, 0.0
    %v269 = vmul.f32 %v267, 0.2
    %v270 = vsel %vm268, %v267, %v269
    %s271 = scalar_lea.vmem [#allocation11], 128
    %v272 = vld [vmem:[%s271] sm:$0xff]
    %v273 = vld [vmem:[%s271 + $0x8] sm:$0xff]
    %v274 = vld [vmem:[%s271 + $0x10] sm:$0xff]
    %v275 = vld [vmem:[%s271 + $0x18] sm:$0xff]
    %v276 = vld [vmem:[%s271 + $0x20] sm:$0xff]
    %v277 = vld [vmem:[%s271 + $0x28] sm:$0xff]
    %v278 = vld [vmem:[%s271 + $0x30] sm:$0xff]
    %v279 = vld [vmem:[%s271 + $0x38] sm:$0xff]
    %v280 = vld [vmem:[%s271 + $0x40] sm:$0xff]
    %v281 = vld [vmem:[%s271 + $0x48] sm:$0xff]
    %v282 = vld [vmem:[%s271 + $0x50] sm:$0xff]
    %v283 = vld [vmem:[%s271 + $0x58] sm:$0xff]
    %v284 = vld [vmem:[%s271 + $0x60] sm:$0xff]
    %v285 = vld [vmem:[%s271 + $0x68] sm:$0xff]
    %v286 = vld [vmem:[%s271 + $0x70] sm:$0xff]
    %v287 = vld [vmem:[%s271 + $0x78] sm:$0xff]
    %s288 = scalar_lea.vmem %s6, 1
    %v289 = vld [vmem:[%s288] sm:$0x1]
    %s290 = scalar_lea.vmem %s7, 1
    %v291 = vld [vmem:[%s290] sm:$0x1]
    %s292 = scalar_lea.vmem %s8, 1
    %v293 = vld [vmem:[%s292] sm:$0x1]
    %v294 = vpack.c.bf16 %v270, %v270
    %v295 = vpack.c.bf16 %v273, %v272
    %v296 = vpack.c.bf16 %v275, %v274
    %v297 = vpack.c.bf16 %v277, %v276
    %v298 = vpack.c.bf16 %v279, %v278
    %v299 = vpack.c.bf16 %v281, %v280
    %v300 = vpack.c.bf16 %v283, %v282
    %v301 = vpack.c.bf16 %v285, %v284
    %v302 = vpack.c.bf16 %v287, %v286
    %v304 = vperm.slane %v289, 0
    %306 = vmatpush.bf16.msra.mxu0 %v302
    %307 = vmatpush.bf16.msra.mxu0 %v301
    %308 = vmatpush.bf16.msra.mxu0 %v300
    %309 = vmatpush.bf16.msra.mxu0 %v299
    %310 = vmatpush.bf16.msra.mxu0 %v298
    %311 = vmatpush.bf16.msra.mxu0 %v297
    %312 = vmatpush.bf16.msra.mxu0 %v296
    %313 = vmatpush.bf16.msra.mxu0 %v295
    %314 = vmatmul.bf16.gmra.mxu0 %v294
    %v315 = vpop.f32.mrf.mxu0
    %v316 = vadd.f32 %v304, %v315
    %v317 = vpop.f32.mrf.mxu0
    %318 = vdwg.mxu0
    %319 = vadd.xlane.f32.xlu0 %v316
    %v320 = vpop.xlane.xlu0 %319
    %v321 = vmul.f32 %v320, %v166
    %v322 = vsub.f32 %v316, %v321
    %v323 = vmul.f32 %v322, %v322
    %324 = vadd.xlane.f32.xlu0 %v323
    %v325 = vpop.xlane.xlu0 %324
    %v326 = vmul.f32 %v325, %v166
    %v327 = vadd.f32 %v326, 1e-05
    %v328 = vrsqrt.pop %v327
    %v329 = vmul.f32 %v328, %v327
    %v330 = vmul.f32 %v329, %v328
    %v331 = vmul.f32 0.5, %v330
    %v332 = vsub.f32 1.5, %v331
    %v333 = vmul.f32 %v328, %v332
    %vm334 = vweird.f32 %v327
    %vm335 = vweird.f32 %v328
    %vm336 = vmor %vm334, %vm335
    %v337 = vsel %vm336, %v328, %v333
    %v338 = vmul.f32 %v322, %v337
    %v340 = vperm.slane %v291, 0
    %v342 = vmul.f32 %v338, %v340
    %v344 = vperm.slane %v293, 0
    %v346 = vadd.f32 %v342, %v344
    %vm347 = vcmp.gt.f32.partialorder %v346, 0.0
    %v348 = vmul.f32 %v346, 0.2
    %v349 = vsel %vm347, %v346, %v348
    %v350 = vld [vmem:[%s9] sm:$0x1]
    %v352 = vperm.slane %v350, 0
    %v354 = vmul.f32 %v349, %v352
    %355 = vadd.xlane.f32.xlu0 %v354
    %v356 = vpop.xlane.xlu0 %355
    %v357 = vld [vmem:[#allocation2] sm:$0x1]
    %v359 = vperm.slane %v357, 0
    %v361 = vadd.f32 %v356, %v359
    %vm362 = vcmask 7168
    %363 = vst.msk [vmem:[%s11] sm:$0xff] %vm362, %v361
    // Predicated region
    $region70: #{tpu_custom_call.1} parent=1 // pred_check
      _
    $region71: #{tpu_custom_call.1} parent=1 // pred_check_branch
      %365 = sbr.rel (0) target = $region73
    $region72: #{tpu_custom_call.1} parent=1 // pred_region
      _
    $region73: #{tpu_custom_call.1} parent=1 // pred_fallthru
      _
    // Predicated region
    $region74: #{tpu_custom_call.1} parent=1 // pred_check
      _
    $region75: #{tpu_custom_call.1} parent=1 // pred_check_branch
      %367 = sbr.rel (0) target = $region77
    $region76: #{tpu_custom_call.1} parent=1 // pred_region
      _
    $region77: #{tpu_custom_call.1} parent=1 // pred_fallthru
      _
    %368 = vsyncpa [#allocation4], 1
    %369 = vsyncpa [#allocation6], 1
    %370 = vsyncpa [#allocation9], 1
    %371 = vsyncpa [#allocation12], 1

</llo_original>
